<compile_context>
chip_gen: v5e
topology: v5e:2x2
jax: 0.10.0
libtpu: 0.0.40
codegen_flags: <defaults>
</compile_context>

<pallas_src>
import jax
import jax.numpy as jnp
from jax.experimental import pallas as pl
from jax.experimental.pallas import tpu as pltpu

_MIB = 1024 * 1024


def _sigmoid_kernel(x_ref, o_ref):
    # Upcast to f32, compute, downcast on store.  sigmoid(x) = 1/(1+exp(-x));
    # in f32 this saturates correctly to 0 / 1 for |x| large and exp sits on
    # the EUP slot, so the whole thing is free relative to HBM bandwidth.
    x = x_ref[...].astype(jnp.float32)
    o_ref[...] = (1.0 / (1.0 + jnp.exp(-x))).astype(o_ref.dtype)


def _pick_block_bytes() -> int:
    """Generation-aware target block size.

    v7x (64 MiB VMEM/TC, ~3.2 TB/s HBM): 8 MiB blocks keep the ~0.35 us
    per-step overhead below ~7%.  v5e/v6e (128 MiB VMEM, lower BW): 4 MiB
    already hits the HBM roofline.  Either way in+out double buffering is
    <= 32 MiB, under the 48 MiB scoped limit and v7x's 64 MiB physical VMEM.
    """
    try:
        vmem = pltpu.get_tpu_info().vmem_capacity_bytes
    except Exception:
        vmem = 128 * _MIB
    return 8 * _MIB if vmem <= 64 * _MIB else 4 * _MIB


def _num_blocks(units: int, max_tile_units: int) -> int:
    """>=4 blocks (even count) for pipeline overlap + v7x megacore balance."""
    n_blocks = max(4, pl.cdiv(units, max_tile_units))
    return 2 * pl.cdiv(n_blocks, 2)


def pallas_sigmoid(x: jax.Array, *, block_bytes: int | None = None,
                   donate: bool = False) -> jax.Array:
    """Elementwise sigmoid matching torch.Tensor.sigmoid() semantics."""
    orig_shape = x.shape
    dtype = x.dtype
    n = x.size
    if n == 0:
        return x

    if block_bytes is None:
        block_bytes = _pick_block_bytes()
    itemsize = jnp.dtype(dtype).itemsize
    total_bytes = n * itemsize

    cost = pl.CostEstimate(flops=4 * n, transcendentals=n,
                           bytes_accessed=2 * total_bytes)
    cparams = pltpu.CompilerParams(
        dimension_semantics=("parallel",),
        # Guard rail: keep this <= ~56 MiB.  2x in + 2x out buffers of <=8 MiB
        # blocks = <=32 MiB live, safe on v7x's 64 MiB physical VMEM per TC
        # (v5e/v6e have 128 MiB).  Block-size bumps must respect this ceiling.
        vmem_limit_bytes=48 * _MIB,
    )
    aliases = {0: 0} if donate else {}

    # Packed-sublane multiple for the dtype: 8 (f32), 16 (bf16/f16), 32 (int8).
    row_align = max(8, 32 // itemsize)
    # Tiny arrays: one block, no per-step overhead (overlap is irrelevant).
    small = total_bytes <= 2 * _MIB

    flat = jnp.ravel(x)
    # Aligned fast path: widest lane count dividing n exactly -> lane-dense
    # 2-D slab, no padding / slicing.
    lanes = next((c for c in (1024, 512, 256, 128) if n % c == 0), None)

    if lanes is not None:
        rows = n // lanes
        x2d = flat.reshape(rows, lanes)
        if small:
            tile_rows, grid = rows, (1,)
        else:
            max_tile_rows = max(
                row_align,
                (block_bytes // (lanes * itemsize)) // row_align * row_align)
            n_blocks = _num_blocks(rows, max_tile_rows)
            tile_rows = pl.cdiv(pl.cdiv(rows, n_blocks), row_align) * row_align
            # Ragged last block (rows % tile_rows != 0): OOB reads are garbage
            # but go only through elementwise math and the corresponding
            # output writes are masked -> safe for this kernel.
            grid = (pl.cdiv(rows, tile_rows),)
        out2d = pl.pallas_call(
            _sigmoid_kernel,
            out_shape=jax.ShapeDtypeStruct((rows, lanes), dtype),
            grid=grid,
            in_specs=[pl.BlockSpec((tile_rows, lanes), lambda i: (i, 0))],
            out_specs=pl.BlockSpec((tile_rows, lanes), lambda i: (i, 0)),
            compiler_params=cparams,
            cost_estimate=cost,
            input_output_aliases=aliases,
        )(x2d)
        return out2d.reshape(orig_shape)

    # Ragged path: n not a multiple of 128.  Operate directly on the 1-D flat
    # array -- no jnp.pad before and no trailing slice after (each would be a
    # full-array HBM pass).  The ragged last block feeds uninitialized VMEM
    # through exp; those lanes are discarded by the masked writeback, which is
    # safe for a purely elementwise op (do NOT reuse for reductions).
    elem_align = 1024  # keeps every non-final block (8,128)-aligned
    max_tile = max(elem_align,
                   (block_bytes // itemsize) // elem_align * elem_align)
    if small or n <= max_tile:
        tile, grid = n, (1,)  # block == full array dim is always legal
    else:
        n_blocks = _num_blocks(n, max_tile)
        tile = pl.cdiv(pl.cdiv(n, n_blocks), elem_align) * elem_align
        grid = (pl.cdiv(n, tile),)
    out_flat = pl.pallas_call(
        _sigmoid_kernel,
        out_shape=jax.ShapeDtypeStruct((n,), dtype),
        grid=grid,
        in_specs=[pl.BlockSpec((tile,), lambda i: (i,))],
        out_specs=pl.BlockSpec((tile,), lambda i: (i,)),
        compiler_params=cparams,
        cost_estimate=cost,
        input_output_aliases=aliases,
    )(flat)
    return out_flat.reshape(orig_shape)


if __name__ == "__main__":
    key = jax.random.PRNGKey(0)

    # Primary check: NCHW-style input (aligned fast path, single block).
    x = jax.random.normal(key, (2, 4, 16, 16), dtype=jnp.float32)
    y = pallas_sigmoid(x)
    jax.block_until_ready(y)
    y_ref = jax.nn.sigmoid(x)
    assert y.shape == x.shape and y.dtype == x.dtype
    assert jnp.allclose(y, y_ref, atol=1e-6, rtol=1e-6)

    # Ragged size: exercises the 1-D no-pad/no-slice path.
    x2 = jax.random.normal(jax.random.PRNGKey(1), (3, 7, 5), dtype=jnp.float32)
    y2 = pallas_sigmoid(x2)
    jax.block_until_ready(y2)
    assert y2.shape == x2.shape and y2.dtype == x2.dtype
    assert jnp.allclose(y2, jax.nn.sigmoid(x2), atol=1e-6, rtol=1e-6)

    # bf16 input: f32-internal compute, cast on store.
    x3 = jax.random.normal(jax.random.PRNGKey(2), (2, 8, 128), dtype=jnp.bfloat16)
    y3 = pallas_sigmoid(x3)
    jax.block_until_ready(y3)
    assert y3.dtype == jnp.bfloat16
    assert jnp.allclose(y3.astype(jnp.float32),
                        jax.nn.sigmoid(x3.astype(jnp.float32)),
                        atol=1e-2, rtol=1e-2)

    # Multi-block pipelined path (>=4 even grid steps) + opt-in aliasing.
    x4 = jax.random.normal(jax.random.PRNGKey(3), (1024, 1024), dtype=jnp.float32)
    y4 = pallas_sigmoid(x4, donate=True)
    jax.block_until_ready(y4)
    assert jnp.allclose(y4, jax.nn.sigmoid(x4), atol=1e-6, rtol=1e-6)

    print("KERNEL_OK")
</pallas_src>

<mosaic_0001>
module attributes {stable_mosaic.version = 11 : i64} {
  func.func @_sigmoid_kernel(%arg0: i32, %arg1: memref<2x1024xf32, #tpu.memory_space<vmem>>, %arg2: memref<2x1024xf32, #tpu.memory_space<vmem>>) attributes {dimension_semantics = [#tpu.dimension_semantics<parallel>], iteration_bounds = array<i64: 1>, scalar_prefetch = 0 : i64, scratch_operands = 0 : i64, tpu.core_type = #tpu.core_type<tc>, window_params = [{transform_indices = @transform_0, window_bounds = array<i64: 2, 1024>}, {transform_indices = @transform_1, window_bounds = array<i64: 2, 1024>}]} {
    %c0 = arith.constant 0 : index
    %c0_0 = arith.constant 0 : index
    %0 = vector.load %arg1[%c0, %c0_0] : memref<2x1024xf32, #tpu.memory_space<vmem>>, vector<2x1024xf32>
    %cst = arith.constant 0.000000e+00 : f32
    %1 = vector.broadcast %cst : f32 to vector<2x1024xf32>
    %2 = arith.subf %1, %0 : vector<2x1024xf32>
    %3 = math.exp %2 : vector<2x1024xf32>
    %cst_1 = arith.constant 1.000000e+00 : f32
    %4 = vector.broadcast %cst_1 : f32 to vector<2x1024xf32>
    %5 = arith.addf %4, %3 : vector<2x1024xf32>
    %cst_2 = arith.constant 1.000000e+00 : f32
    %6 = vector.broadcast %cst_2 : f32 to vector<2x1024xf32>
    %7 = arith.divf %6, %5 : vector<2x1024xf32>
    %c0_3 = arith.constant 0 : index
    %c0_4 = arith.constant 0 : index
    %8 = vector.load %arg2[%c0_3, %c0_4] : memref<2x1024xf32, #tpu.memory_space<vmem>>, vector<2x1024xf32>
    tpu.vector_store %arg2[%c0_3, %c0_4], %7 {strides = array<i32>} : memref<2x1024xf32, #tpu.memory_space<vmem>>, vector<2x1024xf32>,
    return
  }
  func.func @transform_0(%arg0: i32) -> (i32, i32) {
    %c0_i32 = arith.constant 0 : i32
    %c0_i32_0 = arith.constant 0 : i32
    return %arg0, %c0_i32 : i32, i32
  }
  func.func @transform_1(%arg0: i32) -> (i32, i32) {
    %c0_i32 = arith.constant 0 : i32
    %c0_i32_0 = arith.constant 0 : i32
    return %arg0, %c0_i32 : i32, i32
  }
}

</mosaic_0001>

<llo_original>
// kernel: tpu_custom_call.1
$region0: #{tpu_custom_call.1}
  #allocation0 [shape = 'u32[]', space=smem, size = 0x4, offset = 0x4, fixed_abs, tag = 'smem constant byte address 0x4 - core index']
  #allocation1 [shape = 'u32[72,128]{1,0:T(1,128)}', space=vmem, size = 0x9000, scoped, tag = 'internal scratch']
  %s0 = inlined_call_operand.hbm [shape: f32[2,1024], index: 0, kind: input, shape index: {}]
  %s1 = inlined_call_operand.hbm [shape: f32[2,1024], index: 1, kind: output, shape index: {}]
  %s2 = sld [smem:[#allocation0]]
  $region18: #{tpu_custom_call.1} parent=0
    _
  %s4 = ssub.s32 1, %s2
  %s5 = scalar_select 0, %s4, %s2
  $region1: #{tpu_custom_call.1} parent=0
    #allocation2 [shape = 'u8[8192]{0}', space=vmem, size = 0x2000, scoped, tag = 'input window, operand 0, single buffered']
    #allocation3 [shape = 's32[1]{0}', space=sflag, size = 0x4, scoped, tag = 'scoped memory for tpu_custom_call.1']
    #allocation4 [shape = 's32[1]{0}', space=sflag, size = 0x4, scoped, tag = 'scoped memory for tpu_custom_call.1']
    #allocation5 [shape = 'u8[8192]{0}', space=vmem, size = 0x2000, scoped, tag = 'output window, operand 0, single buffered']
    %6 = vsyncpa [#allocation3], 0
    %7 = vsyncpa [#allocation4], 0
    // Predicated region
    $region2: #{tpu_custom_call.1} parent=1 // pred_check
      _
    $region3: #{tpu_custom_call.1} parent=1 // pred_check_branch
      %9 = sbr.rel (0) target = $region5
    $region4: #{tpu_custom_call.1} parent=1 // pred_region
      %11 = vsyncadd [#allocation3], 0
      %s13 = sshll.u32 %s0, 4
      %s14 = int_to_ptr.hbm [resolvable:$true] %s13
      %s15 = sshll.u32 [#allocation2], 4
      %s16 = int_to_ptr.vmem [resolvable:$true] %s15
      %18 = dma.hbm_to_vmem [thread:$0]  %s14, 256, %s16, [#allocation3]
    $region5: #{tpu_custom_call.1} parent=1 // pred_fallthru
      _
    // Predicated region
    $region6: #{tpu_custom_call.1} parent=1 // pred_check
      _
    $region7: #{tpu_custom_call.1} parent=1 // pred_check_branch
      %20 = sbr.rel (0) target = $region9
    $region8: #{tpu_custom_call.1} parent=1 // pred_region
      %22 = dma.done [#allocation3], 256
    $region9: #{tpu_custom_call.1} parent=1 // pred_fallthru
      _
    %v23 = vld [vmem:[#allocation2] sm:$0xff]
    %v24 = vld [vmem:[#allocation2 + $0x8] sm:$0xff]
    %v25 = vsub.f32 0.0, %v23
    %v26 = vsub.f32 0.0, %v24
    %v27 = vmul.f32 %v25, 1.442695
    %v28 = vpow.pop %v27
    %v29 = vmul.f32 %v26, 1.442695
    %v30 = vpow.pop %v29
    %v31 = vadd.f32 %v28, 1.0
    %v32 = vadd.f32 %v30, 1.0
    %v33 = vrcp.pop %v31
    %v34 = vmul.f32 %v31, %v33
    %v35 = vsub.f32 1.0, %v34
    %v36 = vmul.f32 %v33, %v35
    %v37 = vadd.f32 %v33, %v36
    %vm38 = vweird.f32 %v31
    %vm39 = vweird.f32 %v33
    %vm40 = vmor %vm38, %vm39
    %v41 = vsel %vm40, %v33, %v37
    %v42 = vand.u32 2147483647, %v31
    %vm43 = vcmp.eq.f32.partialorder %v42, 8.507059e+37
    %v44 = vand.u32 %v31, 2147483648
    %v45 = vor.u32 1.1754944e-38, %v44
    %v46 = vsel %vm43, %v45, %v41
    %v47 = vmul.f32 1.0, %v46
    %v48 = vrcp.pop %v32
    %v49 = vmul.f32 %v32, %v48
    %v50 = vsub.f32 1.0, %v49
    %v51 = vmul.f32 %v48, %v50
    %v52 = vadd.f32 %v48, %v51
    %vm53 = vweird.f32 %v32
    %vm54 = vweird.f32 %v48
    %vm55 = vmor %vm53, %vm54
    %v56 = vsel %vm55, %v48, %v52
    %v57 = vand.u32 2147483647, %v32
    %vm58 = vcmp.eq.f32.partialorder %v57, 8.507059e+37
    %v59 = vand.u32 %v32, 2147483648
    %v60 = vor.u32 1.1754944e-38, %v59
    %v61 = vsel %vm58, %v60, %v56
    %v62 = vmul.f32 1.0, %v61
    %63 = vst [vmem:[#allocation5] sm:$0xff] %v47
    %64 = vst [vmem:[#allocation5 + $0x8] sm:$0xff] %v62
    // Predicated region
    $region10: #{tpu_custom_call.1} parent=1 // pred_check
      _
    $region11: #{tpu_custom_call.1} parent=1 // pred_check_branch
      %66 = sbr.rel (0) target = $region13
    $region12: #{tpu_custom_call.1} parent=1 // pred_region
      %68 = vsyncadd [#allocation4], 0
      %s70 = sshll.u32 [#allocation5], 4
      %s71 = int_to_ptr.vmem [resolvable:$true] %s70
      %s72 = sshll.u32 %s1, 4
      %s73 = int_to_ptr.hbm [resolvable:$true] %s72
      %75 = dma.vmem_to_hbm [thread:$0]  %s71, 256, %s73, [#allocation4]
    $region13: #{tpu_custom_call.1} parent=1 // pred_fallthru
      _
    // Predicated region
    $region14: #{tpu_custom_call.1} parent=1 // pred_check
      _
    $region15: #{tpu_custom_call.1} parent=1 // pred_check_branch
      %77 = sbr.rel (0) target = $region17
    $region16: #{tpu_custom_call.1} parent=1 // pred_region
      %79 = dma.done [#allocation4], 256
    $region17: #{tpu_custom_call.1} parent=1 // pred_fallthru
      _
    %80 = vsyncpa [#allocation3], 1
    %81 = vsyncpa [#allocation4], 1

</llo_original>
